<compile_context>
chip_gen: v7x
topology: tpu7x:2x2x1
jax: 0.10.0
libtpu: 0.0.40
codegen_flags: <defaults>
</compile_context>

<pallas_src>
import jax
import jax.numpy as jnp
from jax.experimental import pallas as pl
from jax.experimental.pallas import tpu as pltpu

IN_DIM = 20 * 23   # 460  (input feature dim, streamed unpadded)
H1_DIM = 300
H2_DIM = 100
OUT_DIM = 2

# Lane-aligned (multiple-of-128) widths for the VMEM-resident weights and the
# intermediate / output activations.  Zero padding is exact through bias + ReLU.
H1_PAD = 384
H2_PAD = 128
OUT_PAD = 128

# Prefer 512-row batch tiles: ~85% of HBM roofline already, and a longer grid both
# hides the x DMA behind compute and gives v7x megacore >=2 slices to shard.
MAX_TILE_B = 512


def _round_up(n, m):
    return (n + m - 1) // m * m


def _pad2d(a, rows, cols):
    return jnp.pad(a, ((0, rows - a.shape[0]), (0, cols - a.shape[1])))


def _mlp_kernel(x_ref, w1_ref, b1_ref, w2_ref, b2_ref, w3_ref, b3_ref, o_ref):
    # In-kernel cast of the f32 x tile to bf16 -> all three dots hit the native bf16
    # MXU with f32 accumulation; HBM read of x stays single-pass.
    x = x_ref[...].astype(jnp.bfloat16)
    # hidden1 + ReLU (bias add / ReLU in f32).
    h1 = jnp.dot(x, w1_ref[...], preferred_element_type=jnp.float32)
    h1 = jnp.maximum(h1 + b1_ref[...], 0.0)
    # hidden2 + ReLU
    h2 = jnp.dot(h1.astype(jnp.bfloat16), w2_ref[...],
                 preferred_element_type=jnp.float32)
    h2 = jnp.maximum(h2 + b2_ref[...], 0.0)
    # predict (no activation); padded output columns are exactly zero.
    out = jnp.dot(h2.astype(jnp.bfloat16), w3_ref[...],
                  preferred_element_type=jnp.float32)
    o_ref[...] = (out + b3_ref[...]).astype(o_ref.dtype)


def mlp_forward(x, w1, b1, w2, b2, w3, b3, *, out_dtype=jnp.float32):
    """x: (B, 460).  Weights are (in, out); biases are (1, out).  Returns (B, 2)."""
    B = x.shape[0]

    # Batch tile: sublane-aligned (8), capped at 512, and chosen so the grid has
    # >=4 steps when possible (pipelining + v7x megacore).
    tile_b = min(MAX_TILE_B, _round_up(max(-(-B // 4), 1), 8))
    b_pad = _round_up(B, tile_b)
    grid = (b_pad // tile_b,)

    # Match `input.float()` (no-op if already f32); pad ONLY the batch axis so the big
    # x stream is never re-materialized with a feature-dim pad.
    x_f = x.astype(jnp.float32)
    if b_pad != B:
        x_f = jnp.pad(x_f, ((0, b_pad - B), (0, 0)))
    # NOTE: padded batch rows (>= B) compute relu(b1)-derived junk in the kernel; they
    # are sliced away below and never read.

    # Small weights: zero-pad to lane-aligned widths, cast to bf16 once (VMEM-resident
    # across all grid steps via constant index_maps).  Biases stay f32.
    w1_p = _pad2d(w1, IN_DIM, H1_PAD).astype(jnp.bfloat16)   # (460, 384)
    w2_p = _pad2d(w2, H1_PAD, H2_PAD).astype(jnp.bfloat16)   # (384, 128)
    w3_p = _pad2d(w3, H2_PAD, OUT_PAD).astype(jnp.bfloat16)  # (128, 128)
    b1_p = _pad2d(b1.astype(jnp.float32), 1, H1_PAD)
    b2_p = _pad2d(b2.astype(jnp.float32), 1, H2_PAD)
    b3_p = _pad2d(b3.astype(jnp.float32), 1, OUT_PAD)

    out_itemsize = jnp.dtype(out_dtype).itemsize
    bytes_accessed = (x_f.size * 4
                      + (w1_p.size + w2_p.size + w3_p.size) * 2
                      + (b1_p.size + b2_p.size + b3_p.size) * 4
                      + b_pad * OUT_PAD * out_itemsize)
    cost = pl.CostEstimate(
        flops=2 * B * (IN_DIM * H1_DIM + H1_DIM * H2_DIM + H2_DIM * OUT_DIM),
        transcendentals=0,
        bytes_accessed=bytes_accessed,
    )

    out_padded = pl.pallas_call(
        _mlp_kernel,
        out_shape=jax.ShapeDtypeStruct((b_pad, OUT_PAD), out_dtype),
        grid=grid,
        in_specs=[
            # x: tiled along batch (pipelined / double-buffered).  Last block dim equals
            # the full array dim (460) -> exempt from the 128-divisibility rule.
            pl.BlockSpec((tile_b, IN_DIM), lambda i: (i, 0)),
            # Weights / biases: full blocks, constant index_map -> resident across steps.
            pl.BlockSpec((IN_DIM, H1_PAD), lambda i: (0, 0)),
            pl.BlockSpec((1, H1_PAD), lambda i: (0, 0)),
            pl.BlockSpec((H1_PAD, H2_PAD), lambda i: (0, 0)),
            pl.BlockSpec((1, H2_PAD), lambda i: (0, 0)),
            pl.BlockSpec((H2_PAD, OUT_PAD), lambda i: (0, 0)),
            pl.BlockSpec((1, OUT_PAD), lambda i: (0, 0)),
        ],
        out_specs=pl.BlockSpec((tile_b, OUT_PAD), lambda i: (i, 0)),
        compiler_params=pltpu.CompilerParams(
            dimension_semantics=("parallel",),          # megacore sharding on v7x
            vmem_limit_bytes=32 * 1024 * 1024,          # budget << limit on v5e/v6e/v7x
        ),
        cost_estimate=cost,
    )(x_f, w1_p, b1_p, w2_p, b2_p, w3_p, b3_p)

    # Slice away batch + lane padding (valid output lives in the first 2 columns).
    return out_padded[:B, :OUT_DIM]


def _init_linear(key, fan_in, fan_out):
    # Deterministic synthetic init (PyTorch-style uniform bound 1/sqrt(fan_in)).
    kw, kb = jax.random.split(key)
    bound = 1.0 / jnp.sqrt(float(fan_in))
    w = jax.random.uniform(kw, (fan_in, fan_out), jnp.float32, -bound, bound)
    b = jax.random.uniform(kb, (1, fan_out), jnp.float32, -bound, bound)
    return w, b


if __name__ == "__main__":
    key = jax.random.PRNGKey(0)
    kx, k1, k2, k3 = jax.random.split(key, 4)

    B = 8
    x = jax.random.normal(kx, (B, IN_DIM), jnp.float32)

    w1, b1 = _init_linear(k1, IN_DIM, H1_DIM)
    w2, b2 = _init_linear(k2, H1_DIM, H2_DIM)
    w3, b3 = _init_linear(k3, H2_DIM, OUT_DIM)

    out = mlp_forward(x, w1, b1, w2, b2, w3, b3)
    out = jax.block_until_ready(out)
    assert out.shape == (B, OUT_DIM)

    # Reference 1: same computation with bf16-rounded matmul operands (matches the
    # kernel's bf16-MXU / f32-accumulate path) -> tight tolerance.
    bf = lambda a: a.astype(jnp.bfloat16).astype(jnp.float32)
    ref_bf16 = jnp.maximum(bf(x) @ bf(w1) + b1, 0.0)
    ref_bf16 = jnp.maximum(bf(ref_bf16) @ bf(w2) + b2, 0.0)
    ref_bf16 = bf(ref_bf16) @ bf(w3) + b3
    assert jnp.allclose(out, ref_bf16, atol=5e-3, rtol=5e-3)

    # Reference 2: full f32 math -> looser tolerance (bf16 input rounding only).
    ref_f32 = jnp.maximum(x @ w1 + b1, 0.0)
    ref_f32 = jnp.maximum(ref_f32 @ w2 + b2, 0.0)
    ref_f32 = ref_f32 @ w3 + b3
    assert jnp.allclose(out, ref_f32, atol=5e-2, rtol=5e-2)

    print("KERNEL_OK")
</pallas_src>

<mosaic_0001>
module attributes {stable_mosaic.version = 11 : i64} {
  func.func @_mlp_kernel(%arg0: i32, %arg1: memref<8x460xf32, #tpu.memory_space<vmem>>, %arg2: memref<460x384xbf16, #tpu.memory_space<vmem>>, %arg3: memref<1x384xf32, #tpu.memory_space<vmem>>, %arg4: memref<384x128xbf16, #tpu.memory_space<vmem>>, %arg5: memref<1x128xf32, #tpu.memory_space<vmem>>, %arg6: memref<128x128xbf16, #tpu.memory_space<vmem>>, %arg7: memref<1x128xf32, #tpu.memory_space<vmem>>, %arg8: memref<8x128xf32, #tpu.memory_space<vmem>>) attributes {dimension_semantics = [#tpu.dimension_semantics<parallel>], iteration_bounds = array<i64: 1>, scalar_prefetch = 0 : i64, scratch_operands = 0 : i64, tpu.core_type = #tpu.core_type<tc>, window_params = [{transform_indices = @transform_0, window_bounds = array<i64: 8, 460>}, {pipeline_mode = #tpu.pipeline_mode<synchronous>, transform_indices = @transform_1, window_bounds = array<i64: 460, 384>}, {pipeline_mode = #tpu.pipeline_mode<synchronous>, transform_indices = @transform_2, window_bounds = array<i64: 1, 384>}, {pipeline_mode = #tpu.pipeline_mode<synchronous>, transform_indices = @transform_3, window_bounds = array<i64: 384, 128>}, {pipeline_mode = #tpu.pipeline_mode<synchronous>, transform_indices = @transform_4, window_bounds = array<i64: 1, 128>}, {pipeline_mode = #tpu.pipeline_mode<synchronous>, transform_indices = @transform_5, window_bounds = array<i64: 128, 128>}, {pipeline_mode = #tpu.pipeline_mode<synchronous>, transform_indices = @transform_6, window_bounds = array<i64: 1, 128>}, {transform_indices = @transform_7, window_bounds = array<i64: 8, 128>}]} {
    %c0 = arith.constant 0 : index
    %c0_0 = arith.constant 0 : index
    %0 = vector.load %arg1[%c0, %c0_0] : memref<8x460xf32, #tpu.memory_space<vmem>>, vector<8x460xf32>
    %1 = arith.truncf %0 : vector<8x460xf32> to vector<8x460xbf16>
    %c0_1 = arith.constant 0 : index
    %c0_2 = arith.constant 0 : index
    %2 = vector.load %arg2[%c0_1, %c0_2] : memref<460x384xbf16, #tpu.memory_space<vmem>>, vector<460x384xbf16>
    %cst = arith.constant dense<0.000000e+00> : vector<8x384xf32>
    %3 = tpu.matmul %1, %2, %cst {dimension_numbers = #tpu.dot_dimension_numbers<[1], [0], [0], [1], [0, 0, 1, 1], [], []>} : vector<8x460xbf16>, vector<460x384xbf16>, vector<8x384xf32> -> vector<8x384xf32>
    %c0_3 = arith.constant 0 : index
    %c0_4 = arith.constant 0 : index
    %4 = vector.load %arg3[%c0_3, %c0_4] : memref<1x384xf32, #tpu.memory_space<vmem>>, vector<1x384xf32>
    %5 = vector.broadcast %4 : vector<1x384xf32> to vector<8x384xf32>
    %6 = arith.addf %3, %5 : vector<8x384xf32>
    %cst_5 = arith.constant 0.000000e+00 : f32
    %7 = vector.broadcast %cst_5 : f32 to vector<8x384xf32>
    %8 = arith.maximumf %6, %7 : vector<8x384xf32>
    %9 = arith.truncf %8 : vector<8x384xf32> to vector<8x384xbf16>
    %c0_6 = arith.constant 0 : index
    %c0_7 = arith.constant 0 : index
    %10 = vector.load %arg4[%c0_6, %c0_7] : memref<384x128xbf16, #tpu.memory_space<vmem>>, vector<384x128xbf16>
    %cst_8 = arith.constant dense<0.000000e+00> : vector<8x128xf32>
    %11 = tpu.matmul %9, %10, %cst_8 {dimension_numbers = #tpu.dot_dimension_numbers<[1], [0], [0], [1], [0, 0, 1, 1], [], []>} : vector<8x384xbf16>, vector<384x128xbf16>, vector<8x128xf32> -> vector<8x128xf32>
    %c0_9 = arith.constant 0 : index
    %c0_10 = arith.constant 0 : index
    %12 = vector.load %arg5[%c0_9, %c0_10] : memref<1x128xf32, #tpu.memory_space<vmem>>, vector<1x128xf32>
    %13 = vector.broadcast %12 : vector<1x128xf32> to vector<8x128xf32>
    %14 = arith.addf %11, %13 : vector<8x128xf32>
    %cst_11 = arith.constant 0.000000e+00 : f32
    %15 = vector.broadcast %cst_11 : f32 to vector<8x128xf32>
    %16 = arith.maximumf %14, %15 : vector<8x128xf32>
    %17 = arith.truncf %16 : vector<8x128xf32> to vector<8x128xbf16>
    %c0_12 = arith.constant 0 : index
    %c0_13 = arith.constant 0 : index
    %18 = vector.load %arg6[%c0_12, %c0_13] : memref<128x128xbf16, #tpu.memory_space<vmem>>, vector<128x128xbf16>
    %cst_14 = arith.constant dense<0.000000e+00> : vector<8x128xf32>
    %19 = tpu.matmul %17, %18, %cst_14 {dimension_numbers = #tpu.dot_dimension_numbers<[1], [0], [0], [1], [0, 0, 1, 1], [], []>} : vector<8x128xbf16>, vector<128x128xbf16>, vector<8x128xf32> -> vector<8x128xf32>
    %c0_15 = arith.constant 0 : index
    %c0_16 = arith.constant 0 : index
    %20 = vector.load %arg7[%c0_15, %c0_16] : memref<1x128xf32, #tpu.memory_space<vmem>>, vector<1x128xf32>
    %21 = vector.broadcast %20 : vector<1x128xf32> to vector<8x128xf32>
    %22 = arith.addf %19, %21 : vector<8x128xf32>
    %c0_17 = arith.constant 0 : index
    %c0_18 = arith.constant 0 : index
    %23 = vector.load %arg8[%c0_17, %c0_18] : memref<8x128xf32, #tpu.memory_space<vmem>>, vector<8x128xf32>
    tpu.vector_store %arg8[%c0_17, %c0_18], %22 {strides = array<i32>} : memref<8x128xf32, #tpu.memory_space<vmem>>, vector<8x128xf32>,
    return
  }
  func.func @transform_0(%arg0: i32) -> (i32, i32) {
    %c0_i32 = arith.constant 0 : i32
    %c0_i32_0 = arith.constant 0 : i32
    return %arg0, %c0_i32 : i32, i32
  }
  func.func @transform_1(%arg0: i32) -> (i32, i32) {
    %c0_i32 = arith.constant 0 : i32
    %c0_i32_0 = arith.constant 0 : i32
    %c0_i32_1 = arith.constant 0 : i32
    return %c0_i32, %c0_i32_0 : i32, i32
  }
  func.func @transform_2(%arg0: i32) -> (i32, i32) {
    %c0_i32 = arith.constant 0 : i32
    %c0_i32_0 = arith.constant 0 : i32
    %c0_i32_1 = arith.constant 0 : i32
    return %c0_i32, %c0_i32_0 : i32, i32
  }
  func.func @transform_3(%arg0: i32) -> (i32, i32) {
    %c0_i32 = arith.constant 0 : i32
    %c0_i32_0 = arith.constant 0 : i32
    %c0_i32_1 = arith.constant 0 : i32
    return %c0_i32, %c0_i32_0 : i32, i32
  }
  func.func @transform_4(%arg0: i32) -> (i32, i32) {
    %c0_i32 = arith.constant 0 : i32
    %c0_i32_0 = arith.constant 0 : i32
    %c0_i32_1 = arith.constant 0 : i32
    return %c0_i32, %c0_i32_0 : i32, i32
  }
  func.func @transform_5(%arg0: i32) -> (i32, i32) {
    %c0_i32 = arith.constant 0 : i32
    %c0_i32_0 = arith.constant 0 : i32
    %c0_i32_1 = arith.constant 0 : i32
    return %c0_i32, %c0_i32_0 : i32, i32
  }
  func.func @transform_6(%arg0: i32) -> (i32, i32) {
    %c0_i32 = arith.constant 0 : i32
    %c0_i32_0 = arith.constant 0 : i32
    %c0_i32_1 = arith.constant 0 : i32
    return %c0_i32, %c0_i32_0 : i32, i32
  }
  func.func @transform_7(%arg0: i32) -> (i32, i32) {
    %c0_i32 = arith.constant 0 : i32
    %c0_i32_0 = arith.constant 0 : i32
    return %arg0, %c0_i32 : i32, i32
  }
}

</mosaic_0001>

<llo_original>
// kernel: tpu_custom_call.1
$region0: #{tpu_custom_call.1}
  #allocation0 [shape = 'u32[]', space=smem, size = 0x4, offset = 0x4, fixed_abs, tag = 'smem constant byte address 0x4 - core index']
  #allocation1 [shape = 'u32[144,128]{1,0:T(1,128)}', space=vmem, size = 0x12000, scoped, tag = 'internal scratch']
  %s0 = inlined_call_operand.hbm [shape: f32[8,460], index: 0, kind: input, shape index: {}]
  %s1 = inlined_call_operand.hbm [shape: bf16[460,384], index: 1, kind: input, shape index: {}]
  %s2 = inlined_call_operand.vmem [shape: f32[1,384], index: 2, kind: input, shape index: {}]
  %s3 = inlined_call_operand.hbm [shape: bf16[384,128], index: 3, kind: input, shape index: {}]
  %s4 = inlined_call_operand.vmem [shape: f32[1,128], index: 4, kind: input, shape index: {}]
  %s5 = inlined_call_operand.hbm [shape: bf16[128,128], index: 5, kind: input, shape index: {}]
  %s6 = inlined_call_operand.vmem [shape: f32[1,128], index: 6, kind: input, shape index: {}]
  %s7 = inlined_call_operand.hbm [shape: f32[8,128], index: 7, kind: output, shape index: {}]
  %s8 = sld [smem:[#allocation0]]
  $region54: #{tpu_custom_call.1} parent=0
    _
  %s10 = ssub.s32 1, %s8
  %s11 = scalar_select 0, %s10, %s8
  $region1: #{tpu_custom_call.1} parent=0
    #allocation2 [shape = 'u8[16384]{0}', space=vmem, size = 0x4000, scoped, tag = 'input window, operand 0, single buffered']
    #allocation3 [shape = 's32[1]{0}', space=sflag, size = 0x4, scoped, tag = 'scoped memory for tpu_custom_call.1']
    #allocation4 [shape = 's32[1]{0}', space=sflag, size = 0x4, scoped, tag = 'scoped memory for tpu_custom_call.1']
    #allocation5 [shape = 'u8[356352]{0}', space=vmem, size = 0x57000, scoped, tag = 'input window, operand 1, single buffered']
    #allocation6 [shape = 's32[1]{0}', space=sflag, size = 0x4, scoped, tag = 'scoped memory for tpu_custom_call.1']
    #allocation7 [shape = 'u8[98304]{0}', space=vmem, size = 0x18000, scoped, tag = 'input window, operand 3, single buffered']
    #allocation8 [shape = 'u8[32768]{0}', space=vmem, size = 0x8000, scoped, tag = 'input window, operand 5, single buffered']
    #allocation9 [shape = 's32[1]{0}', space=sflag, size = 0x4, scoped, tag = 'scoped memory for tpu_custom_call.1']
    #allocation10 [shape = 'u8[4096]{0}', space=vmem, size = 0x1000, scoped, tag = 'output window, operand 0, single buffered']
    %12 = vsyncpa [#allocation3], 0
    %13 = vsyncpa [#allocation6], 0
    %14 = vsyncpa [#allocation9], 0
    %15 = vsyncpa [#allocation4], 0
    // Predicated region
    $region2: #{tpu_custom_call.1} parent=1 // pred_check
      _
    $region3: #{tpu_custom_call.1} parent=1 // pred_check_branch
      %17 = sbr.rel (0) target = $region5
    $region4: #{tpu_custom_call.1} parent=1 // pred_region
      %s19 = ssub.s32 512, 512
      %20 = vsyncadd [#allocation3], %s19
      %s22 = sshll.u32 [#allocation2], 4
      %s23 = int_to_ptr.vmem [resolvable:$true] %s22
      %25 = dma.hbm_to_vmem [thread:$0]  %s0, 512, %s23, [#allocation3]
    $region5: #{tpu_custom_call.1} parent=1 // pred_fallthru
      _
    // Predicated region
    $region6: #{tpu_custom_call.1} parent=1 // pred_check
      _
    $region7: #{tpu_custom_call.1} parent=1 // pred_check_branch
      %27 = sbr.rel (0) target = $region9
    $region8: #{tpu_custom_call.1} parent=1 // pred_region
      %s29 = ssub.s32 11136, 11136
      %30 = vsyncadd [#allocation6], %s29
      %s31 = sshll.u32 [#allocation5], 4
      %s32 = int_to_ptr.vmem [resolvable:$true] %s31
      %37 = dma.hbm_to_vmem [thread:$0]  %s1, 11136, %s32, [#allocation6], 192, 192, 12
    $region9: #{tpu_custom_call.1} parent=1 // pred_fallthru
      _
    // Predicated region
    $region10: #{tpu_custom_call.1} parent=1 // pred_check
      _
    $region11: #{tpu_custom_call.1} parent=1 // pred_check_branch
      %39 = sbr.rel (0) target = $region13
    $region12: #{tpu_custom_call.1} parent=1 // pred_region
      _
    $region13: #{tpu_custom_call.1} parent=1 // pred_fallthru
      _
    // Predicated region
    $region14: #{tpu_custom_call.1} parent=1 // pred_check
      _
    $region15: #{tpu_custom_call.1} parent=1 // pred_check_branch
      %41 = sbr.rel (0) target = $region17
    $region16: #{tpu_custom_call.1} parent=1 // pred_region
      %s43 = ssub.s32 3072, 3072
      %44 = vsyncadd [#allocation6], %s43
      %s45 = sshll.u32 [#allocation7], 4
      %s46 = int_to_ptr.vmem [resolvable:$true] %s45
      %51 = dma.hbm_to_vmem [thread:$0]  %s3, 3072, %s46, [#allocation6], 64, 64, 4
    $region17: #{tpu_custom_call.1} parent=1 // pred_fallthru
      _
    // Predicated region
    $region18: #{tpu_custom_call.1} parent=1 // pred_check
      _
    $region19: #{tpu_custom_call.1} parent=1 // pred_check_branch
      %53 = sbr.rel (0) target = $region21
    $region20: #{tpu_custom_call.1} parent=1 // pred_region
      _
    $region21: #{tpu_custom_call.1} parent=1 // pred_fallthru
      _
    // Predicated region
    $region22: #{tpu_custom_call.1} parent=1 // pred_check
      _
    $region23: #{tpu_custom_call.1} parent=1 // pred_check_branch
      %55 = sbr.rel (0) target = $region25
    $region24: #{tpu_custom_call.1} parent=1 // pred_region
      %s57 = ssub.s32 1024, 1024
      %58 = vsyncadd [#allocation9], %s57
      %s59 = sshll.u32 [#allocation8], 4
      %s60 = int_to_ptr.vmem [resolvable:$true] %s59
      %65 = dma.hbm_to_vmem [thread:$0]  %s5, 1024, %s60, [#allocation9], 64, 64, 4
    $region25: #{tpu_custom_call.1} parent=1 // pred_fallthru
      _
    // Predicated region
    $region26: #{tpu_custom_call.1} parent=1 // pred_check
      _
    $region27: #{tpu_custom_call.1} parent=1 // pred_check_branch
      %67 = sbr.rel (0) target = $region29
    $region28: #{tpu_custom_call.1} parent=1 // pred_region
      _
    $region29: #{tpu_custom_call.1} parent=1 // pred_fallthru
      _
    // Predicated region
    $region30: #{tpu_custom_call.1} parent=1 // pred_check
      _
    $region31: #{tpu_custom_call.1} parent=1 // pred_check_branch
      %69 = sbr.rel (0) target = $region33
    $region32: #{tpu_custom_call.1} parent=1 // pred_region
      %70 = dma.done [#allocation3], 512
    $region33: #{tpu_custom_call.1} parent=1 // pred_fallthru
      _
    // Predicated region
    $region34: #{tpu_custom_call.1} parent=1 // pred_check
      _
    $region35: #{tpu_custom_call.1} parent=1 // pred_check_branch
      %72 = sbr.rel (0) target = $region37
    $region36: #{tpu_custom_call.1} parent=1 // pred_region
      %73 = dma.done [#allocation6], 11136
    $region37: #{tpu_custom_call.1} parent=1 // pred_fallthru
      _
    // Predicated region
    $region38: #{tpu_custom_call.1} parent=1 // pred_check
      _
    $region39: #{tpu_custom_call.1} parent=1 // pred_check_branch
      %75 = sbr.rel (0) target = $region41
    $region40: #{tpu_custom_call.1} parent=1 // pred_region
      %76 = dma.done [#allocation6], 3072
    $region41: #{tpu_custom_call.1} parent=1 // pred_fallthru
      _
    // Predicated region
    $region42: #{tpu_custom_call.1} parent=1 // pred_check
      _
    $region43: #{tpu_custom_call.1} parent=1 // pred_check_branch
      %78 = sbr.rel (0) target = $region45
    $region44: #{tpu_custom_call.1} parent=1 // pred_region
      %79 = dma.done [#allocation9], 1024
    $region45: #{tpu_custom_call.1} parent=1 // pred_fallthru
      _
    %v81 = vld [vmem:[#allocation2] sm:$0xff]
    %v82 = vld [vmem:[#allocation2 + $0x8] sm:$0xff]
    %v83 = vld [vmem:[#allocation2 + $0x10] sm:$0xff]
    %v84 = vld [vmem:[#allocation2 + $0x18] sm:$0xff]
    %v85 = vpack.c.bf16 %v81, %v81
    %v86 = vpack.c.bf16 %v82, %v82
    %v87 = vpack.c.bf16 %v83, %v83
    %v88 = vpack.c.bf16 %v84, %v84
    %v89 = vld [vmem:[#allocation5] sm:$0xff]
    %v90 = vld [vmem:[#allocation5 + $0x8] sm:$0xf]
    %v91 = vld [vmem:[#allocation5 + $0xc] sm:$0xff]
    %v92 = vld [vmem:[#allocation5 + $0x14] sm:$0xf]
    %v93 = vld [vmem:[#allocation5 + $0x18] sm:$0xff]
    %v94 = vld [vmem:[#allocation5 + $0x20] sm:$0xf]
    %v95 = vld [vmem:[#allocation5 + $0x24] sm:$0xff]
    %v96 = vld [vmem:[#allocation5 + $0x2c] sm:$0xf]
    %v97 = vld [vmem:[#allocation5 + $0x30] sm:$0xff]
    %v98 = vld [vmem:[#allocation5 + $0x38] sm:$0xf]
    %v99 = vld [vmem:[#allocation5 + $0x3c] sm:$0xff]
    %v100 = vld [vmem:[#allocation5 + $0x44] sm:$0xf]
    %v101 = vld [vmem:[#allocation5 + $0x48] sm:$0xff]
    %v102 = vld [vmem:[#allocation5 + $0x50] sm:$0xf]
    %v103 = vld [vmem:[#allocation5 + $0x54] sm:$0xff]
    %v104 = vld [vmem:[#allocation5 + $0x5c] sm:$0xf]
    %v105 = vld [vmem:[#allocation5 + $0x60] sm:$0xff]
    %v106 = vld [vmem:[#allocation5 + $0x68] sm:$0xf]
    %v107 = vld [vmem:[#allocation5 + $0x6c] sm:$0xff]
    %v108 = vld [vmem:[#allocation5 + $0x74] sm:$0xf]
    %v109 = vld [vmem:[#allocation5 + $0x78] sm:$0xff]
    %v110 = vld [vmem:[#allocation5 + $0x80] sm:$0xf]
    %v111 = vld [vmem:[#allocation5 + $0x84] sm:$0xff]
    %v112 = vld [vmem:[#allocation5 + $0x8c] sm:$0xf]
    %v113 = vld [vmem:[#allocation5 + $0x90] sm:$0xff]
    %v114 = vld [vmem:[#allocation5 + $0x98] sm:$0xf]
    %v115 = vld [vmem:[#allocation5 + $0x9c] sm:$0xff]
    %v116 = vld [vmem:[#allocation5 + $0xa4] sm:$0xf]
    %v117 = vld [vmem:[#allocation5 + $0xa8] sm:$0xff]
    %v118 = vld [vmem:[#allocation5 + $0xb0] sm:$0xf]
    %v119 = vld [vmem:[#allocation5 + $0xb4] sm:$0xff]
    %v120 = vld [vmem:[#allocation5 + $0xbc] sm:$0xf]
    %v121 = vld [vmem:[#allocation5 + $0xc0] sm:$0xff]
    %v122 = vld [vmem:[#allocation5 + $0xc8] sm:$0xf]
    %v123 = vld [vmem:[#allocation5 + $0xcc] sm:$0xff]
    %v124 = vld [vmem:[#allocation5 + $0xd4] sm:$0xf]
    %v125 = vld [vmem:[#allocation5 + $0xd8] sm:$0xff]
    %v126 = vld [vmem:[#allocation5 + $0xe0] sm:$0xf]
    %v127 = vld [vmem:[#allocation5 + $0xe4] sm:$0xff]
    %v128 = vld [vmem:[#allocation5 + $0xec] sm:$0xf]
    %v129 = vld [vmem:[#allocation5 + $0xf0] sm:$0xff]
    %v130 = vld [vmem:[#allocation5 + $0xf8] sm:$0xf]
    %v131 = vld [vmem:[#allocation5 + $0xfc] sm:$0xff]
    %v132 = vld [vmem:[#allocation5 + $0x104] sm:$0xf]
    %v133 = vld [vmem:[#allocation5 + $0x108] sm:$0xff]
    %v134 = vld [vmem:[#allocation5 + $0x110] sm:$0xf]
    %v135 = vld [vmem:[#allocation5 + $0x114] sm:$0xff]
    %v136 = vld [vmem:[#allocation5 + $0x11c] sm:$0xf]
    %v137 = vld [vmem:[#allocation5 + $0x120] sm:$0xff]
    %v138 = vld [vmem:[#allocation5 + $0x128] sm:$0xf]
    %v139 = vld [vmem:[#allocation5 + $0x12c] sm:$0xff]
    %v140 = vld [vmem:[#allocation5 + $0x134] sm:$0xf]
    %v141 = vld [vmem:[#allocation5 + $0x138] sm:$0xff]
    %v142 = vld [vmem:[#allocation5 + $0x140] sm:$0xf]
    %v143 = vld [vmem:[#allocation5 + $0x144] sm:$0xff]
    %v144 = vld [vmem:[#allocation5 + $0x14c] sm:$0xf]
    %v145 = vld [vmem:[#allocation5 + $0x150] sm:$0xff]
    %v146 = vld [vmem:[#allocation5 + $0x158] sm:$0xf]
    %v147 = vld [vmem:[#allocation5 + $0x15c] sm:$0xff]
    %v148 = vld [vmem:[#allocation5 + $0x164] sm:$0xf]
    %v149 = vld [vmem:[#allocation5 + $0x168] sm:$0xff]
    %v150 = vld [vmem:[#allocation5 + $0x170] sm:$0xf]
    %v151 = vld [vmem:[#allocation5 + $0x174] sm:$0xff]
    %v152 = vld [vmem:[#allocation5 + $0x17c] sm:$0xf]
    %v153 = vld [vmem:[#allocation5 + $0x180] sm:$0xff]
    %v154 = vld [vmem:[#allocation5 + $0x188] sm:$0xf]
    %v155 = vld [vmem:[#allocation5 + $0x18c] sm:$0xff]
    %v156 = vld [vmem:[#allocation5 + $0x194] sm:$0xf]
    %v157 = vld [vmem:[#allocation5 + $0x198] sm:$0xff]
    %v158 = vld [vmem:[#allocation5 + $0x1a0] sm:$0xf]
    %v159 = vld [vmem:[#allocation5 + $0x1a4] sm:$0xff]
    %v160 = vld [vmem:[#allocation5 + $0x1ac] sm:$0xf]
    %v161 = vld [vmem:[#allocation5 + $0x1b0] sm:$0xff]
    %v162 = vld [vmem:[#allocation5 + $0x1b8] sm:$0xf]
    %v163 = vld [vmem:[#allocation5 + $0x1bc] sm:$0xff]
    %v164 = vld [vmem:[#allocation5 + $0x1c4] sm:$0xf]
    %v165 = vld [vmem:[#allocation5 + $0x1c8] sm:$0xff]
    %v166 = vld [vmem:[#allocation5 + $0x1d0] sm:$0xf]
    %v167 = vld [vmem:[#allocation5 + $0x1d4] sm:$0xff]
    %v168 = vld [vmem:[#allocation5 + $0x1dc] sm:$0xf]
    %v169 = vld [vmem:[#allocation5 + $0x1e0] sm:$0xff]
    %v170 = vld [vmem:[#allocation5 + $0x1e8] sm:$0xf]
    %v171 = vld [vmem:[#allocation5 + $0x1ec] sm:$0xff]
    %v172 = vld [vmem:[#allocation5 + $0x1f4] sm:$0xf]
    %v173 = vld [vmem:[#allocation5 + $0x1f8] sm:$0xff]
    %v174 = vld [vmem:[#allocation5 + $0x200] sm:$0xf]
    %v175 = vld [vmem:[#allocation5 + $0x204] sm:$0xff]
    %v176 = vld [vmem:[#allocation5 + $0x20c] sm:$0xf]
    %v177 = vld [vmem:[#allocation5 + $0x210] sm:$0xff]
    %v178 = vld [vmem:[#allocation5 + $0x218] sm:$0xf]
    %v179 = vld [vmem:[#allocation5 + $0x21c] sm:$0xff]
    %v180 = vld [vmem:[#allocation5 + $0x224] sm:$0xf]
    %v181 = vld [vmem:[#allocation5 + $0x228] sm:$0xff]
    %v182 = vld [vmem:[#allocation5 + $0x230] sm:$0xf]
    %v183 = vld [vmem:[#allocation5 + $0x234] sm:$0xff]
    %v184 = vld [vmem:[#allocation5 + $0x23c] sm:$0xf]
    %v185 = vld [vmem:[#allocation5 + $0x240] sm:$0xff]
    %v186 = vld [vmem:[#allocation5 + $0x248] sm:$0xf]
    %v187 = vld [vmem:[#allocation5 + $0x24c] sm:$0xff]
    %v188 = vld [vmem:[#allocation5 + $0x254] sm:$0xf]
    %v189 = vld [vmem:[#allocation5 + $0x258] sm:$0xff]
    %v190 = vld [vmem:[#allocation5 + $0x260] sm:$0xf]
    %v191 = vld [vmem:[#allocation5 + $0x264] sm:$0xff]
    %v192 = vld [vmem:[#allocation5 + $0x26c] sm:$0xf]
    %v193 = vld [vmem:[#allocation5 + $0x270] sm:$0xff]
    %v194 = vld [vmem:[#allocation5 + $0x278] sm:$0xf]
    %v195 = vld [vmem:[#allocation5 + $0x27c] sm:$0xff]
    %v196 = vld [vmem:[#allocation5 + $0x284] sm:$0xf]
    %v197 = vld [vmem:[#allocation5 + $0x288] sm:$0xff]
    %v198 = vld [vmem:[#allocation5 + $0x290] sm:$0xf]
    %v199 = vld [vmem:[#allocation5 + $0x294] sm:$0xff]
    %v200 = vld [vmem:[#allocation5 + $0x29c] sm:$0xf]
    %v201 = vld [vmem:[#allocation5 + $0x2a0] sm:$0xff]
    %v202 = vld [vmem:[#allocation5 + $0x2a8] sm:$0xf]
    %v203 = vld [vmem:[#allocation5 + $0x2ac] sm:$0x33]
    %v204 = vld [vmem:[#allocation5 + $0x2b4] sm:$0x3]
    %v205 = vld [vmem:[%s2] sm:$0x7]
    %v207 = vlaneseq
    %v208 = vshrl.u32 %v207, 7
    %v209 = vsub.s32 0, %v208
    %v210 = vrot.slane %v205, %v209
    %v211 = vlaneseq
    %v212 = vshrl.u32 %v211, 7
    %v213 = vsub.s32 1, %v212
    %v214 = vrot.slane %v205, %v213
    %v215 = vlaneseq
    %v216 = vshrl.u32 %v215, 7
    %v217 = vsub.s32 2, %v216
    %v218 = vrot.slane %v205, %v217
    %v338 = vunpack.c.l.b16 %v89
    %v339 = vunpack.c.h.b16 %v89
    %v340 = vunpack.c.l.b16 %v90
    %v341 = vunpack.c.l.b16 %v91
    %v342 = vunpack.c.h.b16 %v91
    %v343 = vunpack.c.l.b16 %v92
    %v344 = vunpack.c.l.b16 %v93
    %v345 = vunpack.c.h.b16 %v93
    %v346 = vunpack.c.l.b16 %v94
    %v347 = vunpack.c.l.b16 %v95
    %v348 = vunpack.c.h.b16 %v95
    %v349 = vunpack.c.l.b16 %v96
    %v350 = vunpack.c.l.b16 %v97
    %v351 = vunpack.c.h.b16 %v97
    %v352 = vunpack.c.l.b16 %v98
    %v353 = vunpack.c.l.b16 %v99
    %v354 = vunpack.c.h.b16 %v99
    %v355 = vunpack.c.l.b16 %v100
    %v356 = vunpack.c.l.b16 %v101
    %v357 = vunpack.c.h.b16 %v101
    %v358 = vunpack.c.l.b16 %v102
    %v359 = vunpack.c.l.b16 %v103
    %v360 = vunpack.c.h.b16 %v103
    %v361 = vunpack.c.l.b16 %v104
    %v362 = vunpack.c.l.b16 %v105
    %v363 = vunpack.c.h.b16 %v105
    %v364 = vunpack.c.l.b16 %v106
    %v365 = vunpack.c.l.b16 %v107
    %v366 = vunpack.c.h.b16 %v107
    %v367 = vunpack.c.l.b16 %v108
    %v368 = vunpack.c.l.b16 %v109
    %v369 = vunpack.c.h.b16 %v109
    %v370 = vunpack.c.l.b16 %v110
    %v371 = vunpack.c.l.b16 %v111
    %v372 = vunpack.c.h.b16 %v111
    %v373 = vunpack.c.l.b16 %v112
    %v374 = vunpack.c.l.b16 %v113
    %v375 = vunpack.c.h.b16 %v113
    %v376 = vunpack.c.l.b16 %v114
    %v377 = vunpack.c.l.b16 %v115
    %v378 = vunpack.c.h.b16 %v115
    %v379 = vunpack.c.l.b16 %v116
    %v380 = vunpack.c.l.b16 %v117
    %v381 = vunpack.c.h.b16 %v117
    %v382 = vunpack.c.l.b16 %v118
    %v383 = vunpack.c.l.b16 %v119
    %v384 = vunpack.c.h.b16 %v119
    %v385 = vunpack.c.l.b16 %v120
    %v386 = vunpack.c.l.b16 %v121
    %v387 = vunpack.c.h.b16 %v121
    %v388 = vunpack.c.l.b16 %v122
    %v389 = vunpack.c.l.b16 %v123
    %v390 = vunpack.c.h.b16 %v123
    %v391 = vunpack.c.l.b16 %v124
    %v392 = vunpack.c.l.b16 %v125
    %v393 = vunpack.c.h.b16 %v125
    %v394 = vunpack.c.l.b16 %v126
    %v395 = vunpack.c.l.b16 %v127
    %v396 = vunpack.c.h.b16 %v127
    %v397 = vunpack.c.l.b16 %v128
    %v398 = vunpack.c.l.b16 %v129
    %v399 = vunpack.c.h.b16 %v129
    %v400 = vunpack.c.l.b16 %v130
    %v401 = vunpack.c.l.b16 %v131
    %v402 = vunpack.c.h.b16 %v131
    %v403 = vunpack.c.l.b16 %v132
    %v404 = vunpack.c.l.b16 %v133
    %v405 = vunpack.c.h.b16 %v133
    %v406 = vunpack.c.l.b16 %v134
    %v407 = vunpack.c.l.b16 %v135
    %v408 = vunpack.c.h.b16 %v135
    %v409 = vunpack.c.l.b16 %v136
    %v410 = vunpack.c.l.b16 %v137
    %v411 = vunpack.c.h.b16 %v137
    %v412 = vunpack.c.l.b16 %v138
    %v413 = vunpack.c.l.b16 %v139
    %v414 = vunpack.c.h.b16 %v139
    %v415 = vunpack.c.l.b16 %v140
    %v416 = vunpack.c.l.b16 %v141
    %v417 = vunpack.c.h.b16 %v141
    %v418 = vunpack.c.l.b16 %v142
    %v419 = vunpack.c.l.b16 %v143
    %v420 = vunpack.c.h.b16 %v143
    %v421 = vunpack.c.l.b16 %v144
    %v422 = vunpack.c.l.b16 %v145
    %v423 = vunpack.c.h.b16 %v145
    %v424 = vunpack.c.l.b16 %v146
    %v425 = vunpack.c.l.b16 %v147
    %v426 = vunpack.c.h.b16 %v147
    %v427 = vunpack.c.l.b16 %v148
    %v428 = vunpack.c.l.b16 %v149
    %v429 = vunpack.c.h.b16 %v149
    %v430 = vunpack.c.l.b16 %v150
    %v431 = vunpack.c.l.b16 %v151
    %v432 = vunpack.c.h.b16 %v151
    %v433 = vunpack.c.l.b16 %v152
    %v434 = vunpack.c.l.b16 %v153
    %v435 = vunpack.c.h.b16 %v153
    %v436 = vunpack.c.l.b16 %v154
    %v437 = vunpack.c.l.b16 %v155
    %v438 = vunpack.c.h.b16 %v155
    %v439 = vunpack.c.l.b16 %v156
    %v440 = vunpack.c.l.b16 %v157
    %v441 = vunpack.c.h.b16 %v157
    %v442 = vunpack.c.l.b16 %v158
    %v443 = vunpack.c.l.b16 %v159
    %v444 = vunpack.c.h.b16 %v159
    %v445 = vunpack.c.l.b16 %v160
    %v446 = vunpack.c.l.b16 %v161
    %v447 = vunpack.c.h.b16 %v161
    %v448 = vunpack.c.l.b16 %v162
    %v449 = vunpack.c.l.b16 %v163
    %v450 = vunpack.c.h.b16 %v163
    %v451 = vunpack.c.l.b16 %v164
    %v452 = vunpack.c.l.b16 %v165
    %v453 = vunpack.c.h.b16 %v165
    %v454 = vunpack.c.l.b16 %v166
    %v455 = vunpack.c.l.b16 %v167
    %v456 = vunpack.c.h.b16 %v167
    %v457 = vunpack.c.l.b16 %v168
    %v458 = vunpack.c.l.b16 %v169
    %v459 = vunpack.c.h.b16 %v169
    %v460 = vunpack.c.l.b16 %v170
    %v461 = vunpack.c.l.b16 %v171
    %v462 = vunpack.c.h.b16 %v171
    %v463 = vunpack.c.l.b16 %v172
    %v464 = vunpack.c.l.b16 %v173
    %v465 = vunpack.c.h.b16 %v173
    %v466 = vunpack.c.l.b16 %v174
    %v467 = vunpack.c.l.b16 %v175
    %v468 = vunpack.c.h.b16 %v175
    %v469 = vunpack.c.l.b16 %v176
    %v470 = vunpack.c.l.b16 %v177
    %v471 = vunpack.c.h.b16 %v177
    %v472 = vunpack.c.l.b16 %v178
    %v473 = vunpack.c.l.b16 %v179
    %v474 = vunpack.c.h.b16 %v179
    %v475 = vunpack.c.l.b16 %v180
    %v476 = vunpack.c.l.b16 %v181
    %v477 = vunpack.c.h.b16 %v181
    %v478 = vunpack.c.l.b16 %v182
    %v479 = vunpack.c.l.b16 %v183
    %v480 = vunpack.c.h.b16 %v183
    %v481 = vunpack.c.l.b16 %v184
    %v482 = vunpack.c.l.b16 %v185
    %v483 = vunpack.c.h.b16 %v185
    %v484 = vunpack.c.l.b16 %v186
    %v485 = vunpack.c.l.b16 %v187
    %v486 = vunpack.c.h.b16 %v187
    %v487 = vunpack.c.l.b16 %v188
    %v488 = vunpack.c.l.b16 %v189
    %v489 = vunpack.c.h.b16 %v189
    %v490 = vunpack.c.l.b16 %v190
    %v491 = vunpack.c.l.b16 %v191
    %v492 = vunpack.c.h.b16 %v191
    %v493 = vunpack.c.l.b16 %v192
    %v494 = vunpack.c.l.b16 %v193
    %v495 = vunpack.c.h.b16 %v193
    %v496 = vunpack.c.l.b16 %v194
    %v497 = vunpack.c.l.b16 %v195
    %v498 = vunpack.c.h.b16 %v195
    %v499 = vunpack.c.l.b16 %v196
    %v500 = vunpack.c.l.b16 %v197
    %v501 = vunpack.c.h.b16 %v197
    %v502 = vunpack.c.l.b16 %v198
    %v503 = vunpack.c.l.b16 %v199
    %v504 = vunpack.c.h.b16 %v199
    %v505 = vunpack.c.l.b16 %v200
    %v506 = vunpack.c.l.b16 %v201
    %v507 = vunpack.c.h.b16 %v201
    %v508 = vunpack.c.l.b16 %v202
    %v509 = vunpack.c.l.b16 %v203
    %v510 = vunpack.c.h.b16 %v203
    %v511 = vunpack.c.l.b16 %v204
    %v512 = vpack.c.b16 %v341, %v338
    %v513 = vpack.c.b16 %v342, %v339
    %v514 = vpack.c.b16 %v343, %v340
    %v515 = vpack.c.b16 %v347, %v344
    %v516 = vpack.c.b16 %v348, %v345
    %v517 = vpack.c.b16 %v349, %v346
    %v518 = vpack.c.b16 %v353, %v350
    %v519 = vpack.c.b16 %v354, %v351
    %v520 = vpack.c.b16 %v355, %v352
    %v521 = vpack.c.b16 %v359, %v356
    %v522 = vpack.c.b16 %v360, %v357
    %v523 = vpack.c.b16 %v361, %v358
    %v524 = vpack.c.b16 %v365, %v362
    %v525 = vpack.c.b16 %v366, %v363
    %v526 = vpack.c.b16 %v367, %v364
    %v527 = vpack.c.b16 %v371, %v368
    %v528 = vpack.c.b16 %v372, %v369
    %v529 = vpack.c.b16 %v373, %v370
    %v530 = vpack.c.b16 %v377, %v374
    %v531 = vpack.c.b16 %v378, %v375
    %v532 = vpack.c.b16 %v379, %v376
    %v533 = vpack.c.b16 %v383, %v380
    %v534 = vpack.c.b16 %v384, %v381
    %v535 = vpack.c.b16 %v385, %v382
    %v536 = vpack.c.b16 %v389, %v386
    %v537 = vpack.c.b16 %v390, %v387
    %v538 = vpack.c.b16 %v391, %v388
    %v539 = vpack.c.b16 %v395, %v392
    %v540 = vpack.c.b16 %v396, %v393
    %v541 = vpack.c.b16 %v397, %v394
    %v542 = vpack.c.b16 %v401, %v398
    %v543 = vpack.c.b16 %v402, %v399
    %v544 = vpack.c.b16 %v403, %v400
    %v545 = vpack.c.b16 %v407, %v404
    %v546 = vpack.c.b16 %v408, %v405
    %v547 = vpack.c.b16 %v409, %v406
    %v548 = vpack.c.b16 %v413, %v410
    %v549 = vpack.c.b16 %v414, %v411
    %v550 = vpack.c.b16 %v415, %v412
    %v551 = vpack.c.b16 %v419, %v416
    %v552 = vpack.c.b16 %v420, %v417
    %v553 = vpack.c.b16 %v421, %v418
    %v554 = vpack.c.b16 %v425, %v422
    %v555 = vpack.c.b16 %v426, %v423
    %v556 = vpack.c.b16 %v427, %v424
    %v557 = vpack.c.b16 %v431, %v428
    %v558 = vpack.c.b16 %v432, %v429
    %v559 = vpack.c.b16 %v433, %v430
    %v560 = vpack.c.b16 %v437, %v434
    %v561 = vpack.c.b16 %v438, %v435
    %v562 = vpack.c.b16 %v439, %v436
    %v563 = vpack.c.b16 %v443, %v440
    %v564 = vpack.c.b16 %v444, %v441
    %v565 = vpack.c.b16 %v445, %v442
    %v566 = vpack.c.b16 %v449, %v446
    %v567 = vpack.c.b16 %v450, %v447
    %v568 = vpack.c.b16 %v451, %v448
    %v569 = vpack.c.b16 %v455, %v452
    %v570 = vpack.c.b16 %v456, %v453
    %v571 = vpack.c.b16 %v457, %v454
    %v572 = vpack.c.b16 %v461, %v458
    %v573 = vpack.c.b16 %v462, %v459
    %v574 = vpack.c.b16 %v463, %v460
    %v575 = vpack.c.b16 %v467, %v464
    %v576 = vpack.c.b16 %v468, %v465
    %v577 = vpack.c.b16 %v469, %v466
    %v578 = vpack.c.b16 %v473, %v470
    %v579 = vpack.c.b16 %v474, %v471
    %v580 = vpack.c.b16 %v475, %v472
    %v581 = vpack.c.b16 %v479, %v476
    %v582 = vpack.c.b16 %v480, %v477
    %v583 = vpack.c.b16 %v481, %v478
    %v584 = vpack.c.b16 %v485, %v482
    %v585 = vpack.c.b16 %v486, %v483
    %v586 = vpack.c.b16 %v487, %v484
    %v587 = vpack.c.b16 %v491, %v488
    %v588 = vpack.c.b16 %v492, %v489
    %v589 = vpack.c.b16 %v493, %v490
    %v590 = vpack.c.b16 %v497, %v494
    %v591 = vpack.c.b16 %v498, %v495
    %v592 = vpack.c.b16 %v499, %v496
    %v593 = vpack.c.b16 %v503, %v500
    %v594 = vpack.c.b16 %v504, %v501
    %v595 = vpack.c.b16 %v505, %v502
    %v596 = vpack.c.b16 %v509, %v506
    %v597 = vpack.c.b16 %v510, %v507
    %v598 = vpack.c.b16 %v511, %v508
    %vm683 = vcmask 621568
    %v685 = vsel %vm683, %v88, 0
    %vm687 = vcmask 1045504
    %v689 = vsel %vm687, %v596, 0
    %v692 = vsel %vm687, %v597, 0
    %v695 = vsel %vm687, %v598, 0
    %697 = vmatprep.subr.bf16.mxu0 %v513
    %698 = vmatpush1.bf16.msra.mxu0 %v512
    %699 = vmatprep.subr.bf16.mxu0 %v516
    %700 = vmatpush1.bf16.msra.mxu0 %v515
    %701 = vmatprep.subr.bf16.mxu0 %v519
    %702 = vmatpush1.bf16.msra.mxu0 %v518
    %703 = vmatprep.subr.bf16.mxu0 %v522
    %704 = vmatpush1.bf16.msra.mxu0 %v521
    %705 = vmatprep.subr.bf16.mxu0 %v525
    %706 = vmatpush1.bf16.msra.mxu0 %v524
    %707 = vmatprep.subr.bf16.mxu0 %v528
    %708 = vmatpush1.bf16.msra.mxu0 %v527
    %709 = vmatprep.subr.bf16.mxu0 %v531
    %710 = vmatpush1.bf16.msra.mxu0 %v530
    %711 = vmatprep.subr.bf16.mxu0 %v534
    %712 = vmatpush1.bf16.msra.mxu0 %v533
    %713 = vmatprep.subr.bf16.mxu0 %v537
    %714 = vmatpush1.bf16.msra.mxu0 %v536
    %715 = vmatprep.subr.bf16.mxu0 %v540
    %716 = vmatpush1.bf16.msra.mxu0 %v539
    %717 = vmatprep.subr.bf16.mxu0 %v543
    %718 = vmatpush1.bf16.msra.mxu0 %v542
    %719 = vmatprep.subr.bf16.mxu0 %v546
    %720 = vmatpush1.bf16.msra.mxu0 %v545
    %721 = vmatprep.subr.bf16.mxu0 %v549
    %722 = vmatpush1.bf16.msra.mxu0 %v548
    %723 = vmatprep.subr.bf16.mxu0 %v552
    %724 = vmatpush1.bf16.msra.mxu0 %v551
    %725 = vmatprep.subr.bf16.mxu0 %v555
    %726 = vmatpush1.bf16.msra.mxu0 %v554
    %727 = vmatprep.subr.bf16.mxu0 %v558
    %728 = vmatpush1.bf16.msra.mxu0 %v557
    %729 = vmatprep.mubr.bf16.mxu0 %v86
    %730 = vmatmul.mubr.bf16.gmra.mrb[0].mxu0 %v85
    %v731 = vpop.f32.mrb[0].mxu0
    %v732 = vadd.f32 %v210, %v731
    %v733 = vpop.f32.mrb[0].mxu0
    %v734 = vadd.f32 %v214, %v733
    %v735 = vpop.f32.mrb[0].mxu0
    %v736 = vpop.f32.mrb[0].mxu0
    %737 = vdwg.mxu0
    %738 = vmatprep.subr.bf16.mxu0 %v561
    %739 = vmatpush1.bf16.msra.mxu0 %v560
    %740 = vmatprep.subr.bf16.mxu0 %v564
    %741 = vmatpush1.bf16.msra.mxu0 %v563
    %742 = vmatprep.subr.bf16.mxu0 %v567
    %743 = vmatpush1.bf16.msra.mxu0 %v566
    %744 = vmatprep.subr.bf16.mxu0 %v570
    %745 = vmatpush1.bf16.msra.mxu0 %v569
    %746 = vmatprep.subr.bf16.mxu0 %v573
    %747 = vmatpush1.bf16.msra.mxu0 %v572
    %748 = vmatprep.subr.bf16.mxu0 %v576
    %749 = vmatpush1.bf16.msra.mxu0 %v575
    %750 = vmatprep.subr.bf16.mxu0 %v579
    %751 = vmatpush1.bf16.msra.mxu0 %v578
    %752 = vmatprep.subr.bf16.mxu0 %v582
    %753 = vmatpush1.bf16.msra.mxu0 %v581
    %754 = vmatprep.subr.bf16.mxu0 %v585
    %755 = vmatpush1.bf16.msra.mxu0 %v584
    %756 = vmatprep.subr.bf16.mxu0 %v588
    %757 = vmatpush1.bf16.msra.mxu0 %v587
    %758 = vmatprep.subr.bf16.mxu0 %v591
    %759 = vmatpush1.bf16.msra.mxu0 %v590
    %760 = vmatprep.subr.bf16.mxu0 %v594
    %761 = vmatpush1.bf16.msra.mxu0 %v593
    %762 = vmatprep.subr.bf16.mxu0 %v692
    %763 = vmatpush1.bf16.msra.mxu0 %v689
    %764 = vmatprep.subr.bf16.mxu0 0
    %765 = vmatpush1.bf16.msra.mxu0 0
    %766 = vmatprep.subr.bf16.mxu0 0
    %767 = vmatpush1.bf16.msra.mxu0 0
    %768 = vmatprep.subr.bf16.mxu0 0
    %769 = vmatpush1.bf16.msra.mxu0 0
    %770 = vmatprep.mubr.bf16.mxu0 %v685
    %771 = vmatmul.mubr.bf16.gmra.mrb[0].mxu0 %v87
    %v772 = vpop.f32.mrb[0].mxu0
    %v773 = vadd.f32 %v732, %v772
    %v774 = vpop.f32.mrb[0].mxu0
    %v775 = vadd.f32 %v734, %v774
    %v776 = vpop.f32.mrb[0].mxu0
    %v777 = vpop.f32.mrb[0].mxu0
    %778 = vdwg.mxu0
    %779 = vmatprep.subr.bf16.mxu0 0
    %780 = vmatpush1.bf16.msra.mxu0 %v514
    %781 = vmatprep.subr.bf16.mxu0 0
    %782 = vmatpush1.bf16.msra.mxu0 %v517
    %783 = vmatprep.subr.bf16.mxu0 0
    %784 = vmatpush1.bf16.msra.mxu0 %v520
    %785 = vmatprep.subr.bf16.mxu0 0
    %786 = vmatpush1.bf16.msra.mxu0 %v523
    %787 = vmatprep.subr.bf16.mxu0 0
    %788 = vmatpush1.bf16.msra.mxu0 %v526
    %789 = vmatprep.subr.bf16.mxu0 0
    %790 = vmatpush1.bf16.msra.mxu0 %v529
    %791 = vmatprep.subr.bf16.mxu0 0
    %792 = vmatpush1.bf16.msra.mxu0 %v532
    %793 = vmatprep.subr.bf16.mxu0 0
    %794 = vmatpush1.bf16.msra.mxu0 %v535
    %795 = vmatprep.subr.bf16.mxu0 0
    %796 = vmatpush1.bf16.msra.mxu0 %v538
    %797 = vmatprep.subr.bf16.mxu0 0
    %798 = vmatpush1.bf16.msra.mxu0 %v541
    %799 = vmatprep.subr.bf16.mxu0 0
    %800 = vmatpush1.bf16.msra.mxu0 %v544
    %801 = vmatprep.subr.bf16.mxu0 0
    %802 = vmatpush1.bf16.msra.mxu0 %v547
    %803 = vmatprep.subr.bf16.mxu0 0
    %804 = vmatpush1.bf16.msra.mxu0 %v550
    %805 = vmatprep.subr.bf16.mxu0 0
    %806 = vmatpush1.bf16.msra.mxu0 %v553
    %807 = vmatprep.subr.bf16.mxu0 0
    %808 = vmatpush1.bf16.msra.mxu0 %v556
    %809 = vmatprep.subr.bf16.mxu0 0
    %810 = vmatpush1.bf16.msra.mxu0 %v559
    %811 = vmatprep.mubr.bf16.mxu0 %v86
    %812 = vmatmul.mubr.bf16.gmra.mrb[0].mxu0 %v85
    %v813 = vpop.f32.mrb[0].mxu0
    %v814 = vadd.f32 %v218, %v813
    %v815 = vpop.f32.mrb[0].mxu0
    %v816 = vpop.f32.mrb[0].mxu0
    %v817 = vpop.f32.mrb[0].mxu0
    %818 = vdwg.mxu0
    %819 = vmatprep.subr.bf16.mxu0 0
    %820 = vmatpush1.bf16.msra.mxu0 %v562
    %821 = vmatprep.subr.bf16.mxu0 0
    %822 = vmatpush1.bf16.msra.mxu0 %v565
    %823 = vmatprep.subr.bf16.mxu0 0
    %824 = vmatpush1.bf16.msra.mxu0 %v568
    %825 = vmatprep.subr.bf16.mxu0 0
    %826 = vmatpush1.bf16.msra.mxu0 %v571
    %827 = vmatprep.subr.bf16.mxu0 0
    %828 = vmatpush1.bf16.msra.mxu0 %v574
    %829 = vmatprep.subr.bf16.mxu0 0
    %830 = vmatpush1.bf16.msra.mxu0 %v577
    %831 = vmatprep.subr.bf16.mxu0 0
    %832 = vmatpush1.bf16.msra.mxu0 %v580
    %833 = vmatprep.subr.bf16.mxu0 0
    %834 = vmatpush1.bf16.msra.mxu0 %v583
    %835 = vmatprep.subr.bf16.mxu0 0
    %836 = vmatpush1.bf16.msra.mxu0 %v586
    %837 = vmatprep.subr.bf16.mxu0 0
    %838 = vmatpush1.bf16.msra.mxu0 %v589
    %839 = vmatprep.subr.bf16.mxu0 0
    %840 = vmatpush1.bf16.msra.mxu0 %v592
    %841 = vmatprep.subr.bf16.mxu0 0
    %842 = vmatpush1.bf16.msra.mxu0 %v595
    %843 = vmatprep.subr.bf16.mxu0 0
    %844 = vmatpush1.bf16.msra.mxu0 %v695
    %845 = vmatprep.subr.bf16.mxu0 0
    %846 = vmatpush1.bf16.msra.mxu0 0
    %847 = vmatprep.subr.bf16.mxu0 0
    %848 = vmatpush1.bf16.msra.mxu0 0
    %849 = vmatprep.subr.bf16.mxu0 0
    %850 = vmatpush1.bf16.msra.mxu0 0
    %851 = vmatprep.mubr.bf16.mxu0 %v685
    %852 = vmatmul.mubr.bf16.gmra.mrb[0].mxu0 %v87
    %v853 = vpop.f32.mrb[0].mxu0
    %v854 = vadd.f32 %v814, %v853
    %v855 = vpop.f32.mrb[0].mxu0
    %v856 = vpop.f32.mrb[0].mxu0
    %v857 = vpop.f32.mrb[0].mxu0
    %858 = vdwg.mxu0
    %v859 = vmax.f32 %v773, 0.0
    %v860 = vmax.f32 %v775, 0.0
    %v861 = vmax.f32 %v854, 0.0
    %v862 = vpack.c.bf16 %v859, %v859
    %v863 = vpack.c.bf16 %v860, %v860
    %v864 = vpack.c.bf16 %v861, %v861
    %v865 = vld [vmem:[#allocation7] sm:$0xf]
    %v866 = vld [vmem:[#allocation7 + $0x4] sm:$0xf]
    %v867 = vld [vmem:[#allocation7 + $0x8] sm:$0xf]
    %v868 = vld [vmem:[#allocation7 + $0xc] sm:$0xf]
    %v869 = vld [vmem:[#allocation7 + $0x10] sm:$0xf]
    %v870 = vld [vmem:[#allocation7 + $0x14] sm:$0xf]
    %v871 = vld [vmem:[#allocation7 + $0x18] sm:$0xf]
    %v872 = vld [vmem:[#allocation7 + $0x1c] sm:$0xf]
    %v873 = vld [vmem:[#allocation7 + $0x20] sm:$0xf]
    %v874 = vld [vmem:[#allocation7 + $0x24] sm:$0xf]
    %v875 = vld [vmem:[#allocation7 + $0x28] sm:$0xf]
    %v876 = vld [vmem:[#allocation7 + $0x2c] sm:$0xf]
    %v877 = vld [vmem:[#allocation7 + $0x30] sm:$0xf]
    %v878 = vld [vmem:[#allocation7 + $0x34] sm:$0xf]
    %v879 = vld [vmem:[#allocation7 + $0x38] sm:$0xf]
    %v880 = vld [vmem:[#allocation7 + $0x3c] sm:$0xf]
    %v881 = vld [vmem:[#allocation7 + $0x40] sm:$0xf]
    %v882 = vld [vmem:[#allocation7 + $0x44] sm:$0xf]
    %v883 = vld [vmem:[#allocation7 + $0x48] sm:$0xf]
    %v884 = vld [vmem:[#allocation7 + $0x4c] sm:$0xf]
    %v885 = vld [vmem:[#allocation7 + $0x50] sm:$0xf]
    %v886 = vld [vmem:[#allocation7 + $0x54] sm:$0xf]
    %v887 = vld [vmem:[#allocation7 + $0x58] sm:$0xf]
    %v888 = vld [vmem:[#allocation7 + $0x5c] sm:$0xf]
    %v889 = vld [vmem:[#allocation7 + $0x60] sm:$0xf]
    %v890 = vld [vmem:[#allocation7 + $0x64] sm:$0xf]
    %v891 = vld [vmem:[#allocation7 + $0x68] sm:$0xf]
    %v892 = vld [vmem:[#allocation7 + $0x6c] sm:$0xf]
    %v893 = vld [vmem:[#allocation7 + $0x70] sm:$0xf]
    %v894 = vld [vmem:[#allocation7 + $0x74] sm:$0xf]
    %v895 = vld [vmem:[#allocation7 + $0x78] sm:$0xf]
    %v896 = vld [vmem:[#allocation7 + $0x7c] sm:$0xf]
    %v897 = vld [vmem:[#allocation7 + $0x80] sm:$0xf]
    %v898 = vld [vmem:[#allocation7 + $0x84] sm:$0xf]
    %v899 = vld [vmem:[#allocation7 + $0x88] sm:$0xf]
    %v900 = vld [vmem:[#allocation7 + $0x8c] sm:$0xf]
    %v901 = vld [vmem:[#allocation7 + $0x90] sm:$0xf]
    %v902 = vld [vmem:[#allocation7 + $0x94] sm:$0xf]
    %v903 = vld [vmem:[#allocation7 + $0x98] sm:$0xf]
    %v904 = vld [vmem:[#allocation7 + $0x9c] sm:$0xf]
    %v905 = vld [vmem:[#allocation7 + $0xa0] sm:$0xf]
    %v906 = vld [vmem:[#allocation7 + $0xa4] sm:$0xf]
    %v907 = vld [vmem:[#allocation7 + $0xa8] sm:$0xf]
    %v908 = vld [vmem:[#allocation7 + $0xac] sm:$0xf]
    %v909 = vld [vmem:[#allocation7 + $0xb0] sm:$0xf]
    %v910 = vld [vmem:[#allocation7 + $0xb4] sm:$0xf]
    %v911 = vld [vmem:[#allocation7 + $0xb8] sm:$0xf]
    %v912 = vld [vmem:[#allocation7 + $0xbc] sm:$0xf]
    %v913 = vld [vmem:[%s4] sm:$0x1]
    %v915 = vlaneseq
    %v916 = vshrl.u32 %v915, 7
    %v917 = vsub.s32 0, %v916
    %v918 = vrot.slane %v913, %v917
    %v968 = vunpack.c.l.b16 %v865
    %v969 = vunpack.c.l.b16 %v866
    %v970 = vunpack.c.l.b16 %v867
    %v971 = vunpack.c.l.b16 %v868
    %v972 = vunpack.c.l.b16 %v869
    %v973 = vunpack.c.l.b16 %v870
    %v974 = vunpack.c.l.b16 %v871
    %v975 = vunpack.c.l.b16 %v872
    %v976 = vunpack.c.l.b16 %v873
    %v977 = vunpack.c.l.b16 %v874
    %v978 = vunpack.c.l.b16 %v875
    %v979 = vunpack.c.l.b16 %v876
    %v980 = vunpack.c.l.b16 %v877
    %v981 = vunpack.c.l.b16 %v878
    %v982 = vunpack.c.l.b16 %v879
    %v983 = vunpack.c.l.b16 %v880
    %v984 = vunpack.c.l.b16 %v881
    %v985 = vunpack.c.l.b16 %v882
    %v986 = vunpack.c.l.b16 %v883
    %v987 = vunpack.c.l.b16 %v884
    %v988 = vunpack.c.l.b16 %v885
    %v989 = vunpack.c.l.b16 %v886
    %v990 = vunpack.c.l.b16 %v887
    %v991 = vunpack.c.l.b16 %v888
    %v992 = vunpack.c.l.b16 %v889
    %v993 = vunpack.c.l.b16 %v890
    %v994 = vunpack.c.l.b16 %v891
    %v995 = vunpack.c.l.b16 %v892
    %v996 = vunpack.c.l.b16 %v893
    %v997 = vunpack.c.l.b16 %v894
    %v998 = vunpack.c.l.b16 %v895
    %v999 = vunpack.c.l.b16 %v896
    %v1000 = vunpack.c.l.b16 %v897
    %v1001 = vunpack.c.l.b16 %v898
    %v1002 = vunpack.c.l.b16 %v899
    %v1003 = vunpack.c.l.b16 %v900
    %v1004 = vunpack.c.l.b16 %v901
    %v1005 = vunpack.c.l.b16 %v902
    %v1006 = vunpack.c.l.b16 %v903
    %v1007 = vunpack.c.l.b16 %v904
    %v1008 = vunpack.c.l.b16 %v905
    %v1009 = vunpack.c.l.b16 %v906
    %v1010 = vunpack.c.l.b16 %v907
    %v1011 = vunpack.c.l.b16 %v908
    %v1012 = vunpack.c.l.b16 %v909
    %v1013 = vunpack.c.l.b16 %v910
    %v1014 = vunpack.c.l.b16 %v911
    %v1015 = vunpack.c.l.b16 %v912
    %v1016 = vpack.c.b16 %v969, %v968
    %v1017 = vpack.c.b16 %v971, %v970
    %v1018 = vpack.c.b16 %v973, %v972
    %v1019 = vpack.c.b16 %v975, %v974
    %v1020 = vpack.c.b16 %v977, %v976
    %v1021 = vpack.c.b16 %v979, %v978
    %v1022 = vpack.c.b16 %v981, %v980
    %v1023 = vpack.c.b16 %v983, %v982
    %v1024 = vpack.c.b16 %v985, %v984
    %v1025 = vpack.c.b16 %v987, %v986
    %v1026 = vpack.c.b16 %v989, %v988
    %v1027 = vpack.c.b16 %v991, %v990
    %v1028 = vpack.c.b16 %v993, %v992
    %v1029 = vpack.c.b16 %v995, %v994
    %v1030 = vpack.c.b16 %v997, %v996
    %v1031 = vpack.c.b16 %v999, %v998
    %v1032 = vpack.c.b16 %v1001, %v1000
    %v1033 = vpack.c.b16 %v1003, %v1002
    %v1034 = vpack.c.b16 %v1005, %v1004
    %v1035 = vpack.c.b16 %v1007, %v1006
    %v1036 = vpack.c.b16 %v1009, %v1008
    %v1037 = vpack.c.b16 %v1011, %v1010
    %v1038 = vpack.c.b16 %v1013, %v1012
    %v1039 = vpack.c.b16 %v1015, %v1014
    %1064 = vmatprep.subr.bf16.mxu0 0
    %1065 = vmatpush1.bf16.msra.mxu0 %v1016
    %1066 = vmatprep.subr.bf16.mxu0 0
    %1067 = vmatpush1.bf16.msra.mxu0 %v1017
    %1068 = vmatprep.subr.bf16.mxu0 0
    %1069 = vmatpush1.bf16.msra.mxu0 %v1018
    %1070 = vmatprep.subr.bf16.mxu0 0
    %1071 = vmatpush1.bf16.msra.mxu0 %v1019
    %1072 = vmatprep.subr.bf16.mxu0 0
    %1073 = vmatpush1.bf16.msra.mxu0 %v1020
    %1074 = vmatprep.subr.bf16.mxu0 0
    %1075 = vmatpush1.bf16.msra.mxu0 %v1021
    %1076 = vmatprep.subr.bf16.mxu0 0
    %1077 = vmatpush1.bf16.msra.mxu0 %v1022
    %1078 = vmatprep.subr.bf16.mxu0 0
    %1079 = vmatpush1.bf16.msra.mxu0 %v1023
    %1080 = vmatprep.subr.bf16.mxu0 0
    %1081 = vmatpush1.bf16.msra.mxu0 %v1024
    %1082 = vmatprep.subr.bf16.mxu0 0
    %1083 = vmatpush1.bf16.msra.mxu0 %v1025
    %1084 = vmatprep.subr.bf16.mxu0 0
    %1085 = vmatpush1.bf16.msra.mxu0 %v1026
    %1086 = vmatprep.subr.bf16.mxu0 0
    %1087 = vmatpush1.bf16.msra.mxu0 %v1027
    %1088 = vmatprep.subr.bf16.mxu0 0
    %1089 = vmatpush1.bf16.msra.mxu0 %v1028
    %1090 = vmatprep.subr.bf16.mxu0 0
    %1091 = vmatpush1.bf16.msra.mxu0 %v1029
    %1092 = vmatprep.subr.bf16.mxu0 0
    %1093 = vmatpush1.bf16.msra.mxu0 %v1030
    %1094 = vmatprep.subr.bf16.mxu0 0
    %1095 = vmatpush1.bf16.msra.mxu0 %v1031
    %1096 = vmatprep.mubr.bf16.mxu0 %v863
    %1097 = vmatmul.mubr.bf16.gmra.mrb[0].mxu0 %v862
    %v1098 = vpop.f32.mrb[0].mxu0
    %v1099 = vadd.f32 %v918, %v1098
    %v1100 = vpop.f32.mrb[0].mxu0
    %v1101 = vpop.f32.mrb[0].mxu0
    %v1102 = vpop.f32.mrb[0].mxu0
    %1103 = vdwg.mxu0
    %1104 = vmatprep.subr.bf16.mxu0 0
    %1105 = vmatpush1.bf16.msra.mxu0 %v1032
    %1106 = vmatprep.subr.bf16.mxu0 0
    %1107 = vmatpush1.bf16.msra.mxu0 %v1033
    %1108 = vmatprep.subr.bf16.mxu0 0
    %1109 = vmatpush1.bf16.msra.mxu0 %v1034
    %1110 = vmatprep.subr.bf16.mxu0 0
    %1111 = vmatpush1.bf16.msra.mxu0 %v1035
    %1112 = vmatprep.subr.bf16.mxu0 0
    %1113 = vmatpush1.bf16.msra.mxu0 %v1036
    %1114 = vmatprep.subr.bf16.mxu0 0
    %1115 = vmatpush1.bf16.msra.mxu0 %v1037
    %1116 = vmatprep.subr.bf16.mxu0 0
    %1117 = vmatpush1.bf16.msra.mxu0 %v1038
    %1118 = vmatprep.subr.bf16.mxu0 0
    %1119 = vmatpush1.bf16.msra.mxu0 %v1039
    %1120 = vmatprep.subr.bf16.mxu0 0
    %1121 = vmatpush1.bf16.msra.mxu0 0
    %1122 = vmatprep.subr.bf16.mxu0 0
    %1123 = vmatpush1.bf16.msra.mxu0 0
    %1124 = vmatprep.subr.bf16.mxu0 0
    %1125 = vmatpush1.bf16.msra.mxu0 0
    %1126 = vmatprep.subr.bf16.mxu0 0
    %1127 = vmatpush1.bf16.msra.mxu0 0
    %1128 = vmatprep.subr.bf16.mxu0 0
    %1129 = vmatpush1.bf16.msra.mxu0 0
    %1130 = vmatprep.subr.bf16.mxu0 0
    %1131 = vmatpush1.bf16.msra.mxu0 0
    %1132 = vmatprep.subr.bf16.mxu0 0
    %1133 = vmatpush1.bf16.msra.mxu0 0
    %1134 = vmatprep.subr.bf16.mxu0 0
    %1135 = vmatpush1.bf16.msra.mxu0 0
    %1136 = vmatprep.mubr.bf16.mxu0 0
    %1137 = vmatmul.mubr.bf16.gmra.mrb[0].mxu0 %v864
    %v1138 = vpop.f32.mrb[0].mxu0
    %v1139 = vadd.f32 %v1099, %v1138
    %v1140 = vpop.f32.mrb[0].mxu0
    %v1141 = vpop.f32.mrb[0].mxu0
    %v1142 = vpop.f32.mrb[0].mxu0
    %1143 = vdwg.mxu0
    %v1144 = vmax.f32 %v1139, 0.0
    %v1145 = vpack.c.bf16 %v1144, %v1144
    %v1146 = vld [vmem:[#allocation8] sm:$0xf]
    %v1147 = vld [vmem:[#allocation8 + $0x4] sm:$0xf]
    %v1148 = vld [vmem:[#allocation8 + $0x8] sm:$0xf]
    %v1149 = vld [vmem:[#allocation8 + $0xc] sm:$0xf]
    %v1150 = vld [vmem:[#allocation8 + $0x10] sm:$0xf]
    %v1151 = vld [vmem:[#allocation8 + $0x14] sm:$0xf]
    %v1152 = vld [vmem:[#allocation8 + $0x18] sm:$0xf]
    %v1153 = vld [vmem:[#allocation8 + $0x1c] sm:$0xf]
    %v1154 = vld [vmem:[#allocation8 + $0x20] sm:$0xf]
    %v1155 = vld [vmem:[#allocation8 + $0x24] sm:$0xf]
    %v1156 = vld [vmem:[#allocation8 + $0x28] sm:$0xf]
    %v1157 = vld [vmem:[#allocation8 + $0x2c] sm:$0xf]
    %v1158 = vld [vmem:[#allocation8 + $0x30] sm:$0xf]
    %v1159 = vld [vmem:[#allocation8 + $0x34] sm:$0xf]
    %v1160 = vld [vmem:[#allocation8 + $0x38] sm:$0xf]
    %v1161 = vld [vmem:[#allocation8 + $0x3c] sm:$0xf]
    %v1162 = vld [vmem:[%s6] sm:$0x1]
    %v1164 = vlaneseq
    %v1165 = vshrl.u32 %v1164, 7
    %v1166 = vsub.s32 0, %v1165
    %v1167 = vrot.slane %v1162, %v1166
    %v1185 = vunpack.c.l.b16 %v1146
    %v1186 = vunpack.c.l.b16 %v1147
    %v1187 = vunpack.c.l.b16 %v1148
    %v1188 = vunpack.c.l.b16 %v1149
    %v1189 = vunpack.c.l.b16 %v1150
    %v1190 = vunpack.c.l.b16 %v1151
    %v1191 = vunpack.c.l.b16 %v1152
    %v1192 = vunpack.c.l.b16 %v1153
    %v1193 = vunpack.c.l.b16 %v1154
    %v1194 = vunpack.c.l.b16 %v1155
    %v1195 = vunpack.c.l.b16 %v1156
    %v1196 = vunpack.c.l.b16 %v1157
    %v1197 = vunpack.c.l.b16 %v1158
    %v1198 = vunpack.c.l.b16 %v1159
    %v1199 = vunpack.c.l.b16 %v1160
    %v1200 = vunpack.c.l.b16 %v1161
    %v1201 = vpack.c.b16 %v1186, %v1185
    %v1202 = vpack.c.b16 %v1188, %v1187
    %v1203 = vpack.c.b16 %v1190, %v1189
    %v1204 = vpack.c.b16 %v1192, %v1191
    %v1205 = vpack.c.b16 %v1194, %v1193
    %v1206 = vpack.c.b16 %v1196, %v1195
    %v1207 = vpack.c.b16 %v1198, %v1197
    %v1208 = vpack.c.b16 %v1200, %v1199
    %1217 = vmatprep.subr.bf16.mxu0 0
    %1218 = vmatpush1.bf16.msra.mxu0 %v1201
    %1219 = vmatprep.subr.bf16.mxu0 0
    %1220 = vmatpush1.bf16.msra.mxu0 %v1202
    %1221 = vmatprep.subr.bf16.mxu0 0
    %1222 = vmatpush1.bf16.msra.mxu0 %v1203
    %1223 = vmatprep.subr.bf16.mxu0 0
    %1224 = vmatpush1.bf16.msra.mxu0 %v1204
    %1225 = vmatprep.subr.bf16.mxu0 0
    %1226 = vmatpush1.bf16.msra.mxu0 %v1205
    %1227 = vmatprep.subr.bf16.mxu0 0
    %1228 = vmatpush1.bf16.msra.mxu0 %v1206
    %1229 = vmatprep.subr.bf16.mxu0 0
    %1230 = vmatpush1.bf16.msra.mxu0 %v1207
    %1231 = vmatprep.subr.bf16.mxu0 0
    %1232 = vmatpush1.bf16.msra.mxu0 %v1208
    %1233 = vmatprep.subr.bf16.mxu0 0
    %1234 = vmatpush1.bf16.msra.mxu0 0
    %1235 = vmatprep.subr.bf16.mxu0 0
    %1236 = vmatpush1.bf16.msra.mxu0 0
    %1237 = vmatprep.subr.bf16.mxu0 0
    %1238 = vmatpush1.bf16.msra.mxu0 0
    %1239 = vmatprep.subr.bf16.mxu0 0
    %1240 = vmatpush1.bf16.msra.mxu0 0
    %1241 = vmatprep.subr.bf16.mxu0 0
    %1242 = vmatpush1.bf16.msra.mxu0 0
    %1243 = vmatprep.subr.bf16.mxu0 0
    %1244 = vmatpush1.bf16.msra.mxu0 0
    %1245 = vmatprep.subr.bf16.mxu0 0
    %1246 = vmatpush1.bf16.msra.mxu0 0
    %1247 = vmatprep.subr.bf16.mxu0 0
    %1248 = vmatpush1.bf16.msra.mxu0 0
    %1249 = vmatprep.mubr.bf16.mxu0 0
    %1250 = vmatmul.mubr.bf16.gmra.mrb[0].mxu0 %v1145
    %v1251 = vpop.f32.mrb[0].mxu0
    %v1252 = vadd.f32 %v1167, %v1251
    %v1253 = vpop.f32.mrb[0].mxu0
    %v1254 = vpop.f32.mrb[0].mxu0
    %v1255 = vpop.f32.mrb[0].mxu0
    %1256 = vdwg.mxu0
    %1257 = vst [vmem:[#allocation10] sm:$0xff] %v1252
    // Predicated region
    $region46: #{tpu_custom_call.1} parent=1 // pred_check
      _
    $region47: #{tpu_custom_call.1} parent=1 // pred_check_branch
      %1259 = sbr.rel (0) target = $region49
    $region48: #{tpu_custom_call.1} parent=1 // pred_region
      %s1261 = ssub.s32 128, 128
      %1262 = vsyncadd [#allocation4], %s1261
      %s1264 = sshll.u32 [#allocation10], 4
      %s1265 = int_to_ptr.vmem [resolvable:$true] %s1264
      %1267 = dma.vmem_to_hbm [thread:$0]  %s1265, 128, %s7, [#allocation4]
    $region49: #{tpu_custom_call.1} parent=1 // pred_fallthru
      _
    // Predicated region
    $region50: #{tpu_custom_call.1} parent=1 // pred_check
      _
    $region51: #{tpu_custom_call.1} parent=1 // pred_check_branch
      %1269 = sbr.rel (0) target = $region53
    $region52: #{tpu_custom_call.1} parent=1 // pred_region
      %1270 = dma.done [#allocation4], 128
    $region53: #{tpu_custom_call.1} parent=1 // pred_fallthru
      _
    %1271 = vsyncpa [#allocation3], 1
    %1272 = vsyncpa [#allocation6], 1
    %1273 = vsyncpa [#allocation9], 1
    %1274 = vsyncpa [#allocation4], 1

</llo_original>
